<compile_context>
chip_gen: v5e
topology: v5e:2x2
jax: 0.10.0
libtpu: 0.0.40
codegen_flags: <defaults>
</compile_context>

<pallas_src>
import functools

import jax
import jax.numpy as jnp
from jax.experimental import pallas as pl
from jax.experimental.pallas import tpu as pltpu

BN_EPS = 1e-5          # PyTorch BatchNorm1d default eps
L2_CLAMP = 1e-8        # torch.clamp(..., 1e-8) lower bound on the row norm


# --------------------------------------------------------------------------
# Kernel 1: per-feature batch statistics (mean, biased variance over batch)
# --------------------------------------------------------------------------
def bn_stats_kernel(x_ref, mean_ref, var_ref):
    x = x_ref[...].astype(jnp.float32)                    # (N, TC)
    n = x.shape[0]
    mean = jnp.sum(x, axis=0, keepdims=True) * (1.0 / n)  # (1, TC)
    diff = x - mean
    var = jnp.sum(diff * diff, axis=0, keepdims=True) * (1.0 / n)  # biased
    mean_ref[...] = mean
    var_ref[...] = var


# --------------------------------------------------------------------------
# Kernel 2: fused batch-norm apply + row-wise L2 normalization
# --------------------------------------------------------------------------
def bn_l2_kernel(x_ref, mean_ref, var_ref, gamma_ref, beta_ref, o_ref, *, eps):
    x = x_ref[...].astype(jnp.float32)                    # (TR, C)
    inv_std = jax.lax.rsqrt(var_ref[...] + eps)           # (1, C)
    y = (x - mean_ref[...]) * inv_std * gamma_ref[...] + beta_ref[...]

    # row L2 norm, clamped at 1e-8:  1/max(sqrt(s), 1e-8) == rsqrt(max(s, 1e-16))
    sq = jnp.sum(y * y, axis=-1, keepdims=True)           # (TR, 1)
    y = y * jax.lax.rsqrt(jnp.maximum(sq, L2_CLAMP * L2_CLAMP))

    o_ref[...] = y.astype(o_ref.dtype)


# --------------------------------------------------------------------------
# Tiling helper: biggest tile <= target that is a multiple of `align` and
# divides the dimension; fall back to the full dimension (allowed by Pallas).
# --------------------------------------------------------------------------
def _pick_tile(dim, target, align):
    if dim <= target:
        return dim
    t = (target // align) * align
    while t >= align:
        if dim % t == 0:
            return t
        t -= align
    return dim


# --------------------------------------------------------------------------
# Wrapper: ETF_Classifier forward
# --------------------------------------------------------------------------
def etf_classifier_forward(x, gamma, beta, *, eps=BN_EPS,
                           row_tile=256, col_tile=512):
    N, C = x.shape
    gamma2d = gamma.reshape(1, C).astype(jnp.float32)
    beta2d = beta.reshape(1, C).astype(jnp.float32)

    tc = _pick_tile(C, col_tile, 128)
    tr = _pick_tile(N, row_tile, 8)

    # ---- pass 1: per-feature batch statistics --------------------------------
    mean, var = pl.pallas_call(
        bn_stats_kernel,
        out_shape=(jax.ShapeDtypeStruct((1, C), jnp.float32),
                   jax.ShapeDtypeStruct((1, C), jnp.float32)),
        grid=(C // tc,),
        in_specs=[pl.BlockSpec((N, tc), lambda j: (0, j))],
        out_specs=(pl.BlockSpec((1, tc), lambda j: (0, j)),
                   pl.BlockSpec((1, tc), lambda j: (0, j))),
        compiler_params=pltpu.CompilerParams(
            dimension_semantics=("parallel",)),
    )(x)

    # ---- pass 2: fused normalize + row-wise L2 --------------------------------
    kernel = functools.partial(bn_l2_kernel, eps=eps)
    return pl.pallas_call(
        kernel,
        out_shape=jax.ShapeDtypeStruct((N, C), x.dtype),
        grid=(N // tr,),
        in_specs=[
            pl.BlockSpec((tr, C), lambda i: (i, 0)),   # x row block
            pl.BlockSpec((1, C), lambda i: (0, 0)),    # mean  (constant block)
            pl.BlockSpec((1, C), lambda i: (0, 0)),    # var   (constant block)
            pl.BlockSpec((1, C), lambda i: (0, 0)),    # gamma (constant block)
            pl.BlockSpec((1, C), lambda i: (0, 0)),    # beta  (constant block)
        ],
        out_specs=pl.BlockSpec((tr, C), lambda i: (i, 0)),
        compiler_params=pltpu.CompilerParams(
            dimension_semantics=("parallel",)),
    )(x, mean, var, gamma2d, beta2d)


# --------------------------------------------------------------------------
# Pure-JAX reference (mirrors the PyTorch forward in training mode)
# --------------------------------------------------------------------------
def ref_forward(x, gamma, beta, eps=BN_EPS):
    mean = x.mean(axis=0, keepdims=True)
    var = ((x - mean) ** 2).mean(axis=0, keepdims=True)          # biased
    y = (x - mean) / jnp.sqrt(var + eps) * gamma[None, :] + beta[None, :]
    denom = jnp.maximum(jnp.sqrt(jnp.sum(y * y, axis=1, keepdims=True)),
                        L2_CLAMP)
    return y / denom


# --------------------------------------------------------------------------
if __name__ == "__main__":
    key = jax.random.PRNGKey(0)
    kx, kg, kb = jax.random.split(key, 3)

    # small demo shapes: batch=16, feat_in=128 (num_classes is unused in forward)
    N, C = 16, 128
    x = jax.random.normal(kx, (N, C), jnp.float32)
    gamma = 1.0 + 0.1 * jax.random.normal(kg, (C,), jnp.float32)   # BN weight
    beta = 0.1 * jax.random.normal(kb, (C,), jnp.float32)          # BN bias

    out = etf_classifier_forward(x, gamma, beta)
    out = jax.block_until_ready(out)

    ref = ref_forward(x, gamma, beta)
    assert out.shape == (N, C)
    assert jnp.allclose(out, ref, atol=1e-5, rtol=1e-5), (
        "mismatch vs reference: max abs err = %e"
        % float(jnp.max(jnp.abs(out - ref))))

    print("KERNEL_OK")
</pallas_src>

<mosaic_0001>
module attributes {stable_mosaic.version = 11 : i64} {
  func.func @bn_stats_kernel(%arg0: i32, %arg1: memref<16x128xf32, #tpu.memory_space<vmem>>, %arg2: memref<1x128xf32, #tpu.memory_space<vmem>>, %arg3: memref<1x128xf32, #tpu.memory_space<vmem>>) attributes {dimension_semantics = [#tpu.dimension_semantics<parallel>], iteration_bounds = array<i64: 1>, scalar_prefetch = 0 : i64, scratch_operands = 0 : i64, tpu.core_type = #tpu.core_type<tc>, window_params = [{transform_indices = @transform_0, window_bounds = array<i64: 16, 128>}, {transform_indices = @transform_1, window_bounds = array<i64: 1, 128>}, {transform_indices = @transform_2, window_bounds = array<i64: 1, 128>}]} {
    %c0 = arith.constant 0 : index
    %c0_0 = arith.constant 0 : index
    %0 = vector.load %arg1[%c0, %c0_0] : memref<16x128xf32, #tpu.memory_space<vmem>>, vector<16x128xf32>
    %cst = arith.constant dense<0.000000e+00> : vector<128xf32>
    %1 = vector.multi_reduction <add>, %0, %cst [0] : vector<16x128xf32> to vector<128xf32>
    %2 = vector.shape_cast %1 : vector<128xf32> to vector<1x128xf32>
    %cst_1 = arith.constant 6.250000e-02 : f32
    %3 = vector.broadcast %cst_1 : f32 to vector<1x128xf32>
    %4 = arith.mulf %2, %3 : vector<1x128xf32>
    %5 = vector.broadcast %4 : vector<1x128xf32> to vector<16x128xf32>
    %6 = arith.subf %0, %5 : vector<16x128xf32>
    %7 = arith.mulf %6, %6 : vector<16x128xf32>
    %cst_2 = arith.constant dense<0.000000e+00> : vector<128xf32>
    %8 = vector.multi_reduction <add>, %7, %cst_2 [0] : vector<16x128xf32> to vector<128xf32>
    %9 = vector.shape_cast %8 : vector<128xf32> to vector<1x128xf32>
    %cst_3 = arith.constant 6.250000e-02 : f32
    %10 = vector.broadcast %cst_3 : f32 to vector<1x128xf32>
    %11 = arith.mulf %9, %10 : vector<1x128xf32>
    %c0_4 = arith.constant 0 : index
    %c0_5 = arith.constant 0 : index
    %12 = vector.load %arg2[%c0_4, %c0_5] : memref<1x128xf32, #tpu.memory_space<vmem>>, vector<1x128xf32>
    tpu.vector_store %arg2[%c0_4, %c0_5], %4 {strides = array<i32>} : memref<1x128xf32, #tpu.memory_space<vmem>>, vector<1x128xf32>,
    %c0_6 = arith.constant 0 : index
    %c0_7 = arith.constant 0 : index
    %13 = vector.load %arg3[%c0_6, %c0_7] : memref<1x128xf32, #tpu.memory_space<vmem>>, vector<1x128xf32>
    tpu.vector_store %arg3[%c0_6, %c0_7], %11 {strides = array<i32>} : memref<1x128xf32, #tpu.memory_space<vmem>>, vector<1x128xf32>,
    return
  }
  func.func @transform_0(%arg0: i32) -> (i32, i32) {
    %c0_i32 = arith.constant 0 : i32
    %c0_i32_0 = arith.constant 0 : i32
    return %c0_i32, %arg0 : i32, i32
  }
  func.func @transform_1(%arg0: i32) -> (i32, i32) {
    %c0_i32 = arith.constant 0 : i32
    %c0_i32_0 = arith.constant 0 : i32
    return %c0_i32, %arg0 : i32, i32
  }
  func.func @transform_2(%arg0: i32) -> (i32, i32) {
    %c0_i32 = arith.constant 0 : i32
    %c0_i32_0 = arith.constant 0 : i32
    return %c0_i32, %arg0 : i32, i32
  }
}

</mosaic_0001>

<llo_original>
// kernel: tpu_custom_call.1
$region0: #{tpu_custom_call.1}
  #allocation0 [shape = 'u32[]', space=smem, size = 0x4, offset = 0x4, fixed_abs, tag = 'smem constant byte address 0x4 - core index']
  #allocation1 [shape = 'u32[72,128]{1,0:T(1,128)}', space=vmem, size = 0x9000, scoped, tag = 'internal scratch']
  %s0 = inlined_call_operand.hbm [shape: f32[16,128], index: 0, kind: input, shape index: {}]
  %s1 = inlined_call_operand.hbm [shape: f32[1,128], index: 1, kind: output, shape index: {0}]
  %s2 = inlined_call_operand.hbm [shape: f32[1,128], index: 2, kind: output, shape index: {1}]
  %3 = xla_tuple %s1, %s2
  %s4 = sld [smem:[#allocation0]]
  $region26: #{tpu_custom_call.1} parent=0
    _
  %s6 = ssub.s32 1, %s4
  %s7 = scalar_select 0, %s6, %s4
  $region1: #{tpu_custom_call.1} parent=0
    #allocation2 [shape = 'u8[8192]{0}', space=vmem, size = 0x2000, scoped, tag = 'input window, operand 0, single buffered']
    #allocation3 [shape = 's32[1]{0}', space=sflag, size = 0x4, scoped, tag = 'scoped memory for tpu_custom_call.1']
    #allocation4 [shape = 's32[1]{0}', space=sflag, size = 0x4, scoped, tag = 'scoped memory for tpu_custom_call.1']
    #allocation5 [shape = 'u8[512]{0}', space=vmem, size = 0x400, scoped, tag = 'output window, operand 0, single buffered']
    #allocation6 [shape = 'u8[512]{0}', space=vmem, size = 0x400, scoped, tag = 'output window, operand 1, single buffered']
    #allocation7 [shape = 's32[1]{0}', space=sflag, size = 0x4, scoped, tag = 'scoped memory for tpu_custom_call.1']
    %8 = vsyncpa [#allocation3], 0
    %9 = vsyncpa [#allocation4], 0
    %10 = vsyncpa [#allocation7], 0
    // Predicated region
    $region2: #{tpu_custom_call.1} parent=1 // pred_check
      _
    $region3: #{tpu_custom_call.1} parent=1 // pred_check_branch
      %12 = sbr.rel (0) target = $region5
    $region4: #{tpu_custom_call.1} parent=1 // pred_region
      %14 = vsyncadd [#allocation3], 0
      %s15 = sshll.u32 %s0, 4
      %s16 = int_to_ptr.hbm [resolvable:$true] %s15
      %s17 = sshll.u32 [#allocation2], 4
      %s18 = int_to_ptr.vmem [resolvable:$true] %s17
      %23 = dma.hbm_to_vmem [thread:$0]  %s16, 256, %s18, [#allocation3], 128, 128, 8
    $region5: #{tpu_custom_call.1} parent=1 // pred_fallthru
      _
    // Predicated region
    $region6: #{tpu_custom_call.1} parent=1 // pred_check
      _
    $region7: #{tpu_custom_call.1} parent=1 // pred_check_branch
      %25 = sbr.rel (0) target = $region9
    $region8: #{tpu_custom_call.1} parent=1 // pred_region
      %27 = dma.done [#allocation3], 256
    $region9: #{tpu_custom_call.1} parent=1 // pred_fallthru
      _
    %v28 = vld [vmem:[#allocation2] sm:$0xff]
    %v29 = vld [vmem:[#allocation2 + $0x8] sm:$0xff]
    %v30 = vadd.f32 %v28, %v29
    %v31 = vrot.slane %v30, 4
    %v32 = vadd.f32 %v30, %v31
    %v33 = vrot.slane %v32, 2
    %v34 = vadd.f32 %v32, %v33
    %v35 = vrot.slane %v34, 1
    %v36 = vadd.f32 %v34, %v35
    %v37 = vmul.f32 %v36, 0.0625
    %v38 = vsub.f32 %v28, %v37
    %v39 = vsub.f32 %v29, %v37
    %v40 = vmul.f32 %v38, %v38
    %v41 = vmul.f32 %v39, %v39
    %v42 = vadd.f32 %v40, %v41
    %v43 = vrot.slane %v42, 4
    %v44 = vadd.f32 %v42, %v43
    %v45 = vrot.slane %v44, 2
    %v46 = vadd.f32 %v44, %v45
    %v47 = vrot.slane %v46, 1
    %v48 = vadd.f32 %v46, %v47
    %v49 = vmul.f32 %v48, 0.0625
    %50 = vst [vmem:[#allocation5] sm:$0x1] %v37
    %51 = vst [vmem:[#allocation6] sm:$0x1] %v49
    // Predicated region
    $region10: #{tpu_custom_call.1} parent=1 // pred_check
      _
    $region11: #{tpu_custom_call.1} parent=1 // pred_check_branch
      %53 = sbr.rel (0) target = $region13
    $region12: #{tpu_custom_call.1} parent=1 // pred_region
      %55 = vsyncadd [#allocation4], 0
      %s57 = sshll.u32 [#allocation5], 4
      %s58 = int_to_ptr.vmem [resolvable:$true] %s57
      %s59 = sshll.u32 %s1, 4
      %s60 = int_to_ptr.hbm [resolvable:$true] %s59
      %62 = dma.vmem_to_hbm [thread:$0]  %s58, 16, %s60, [#allocation4]
    $region13: #{tpu_custom_call.1} parent=1 // pred_fallthru
      _
    // Predicated region
    $region14: #{tpu_custom_call.1} parent=1 // pred_check
      _
    $region15: #{tpu_custom_call.1} parent=1 // pred_check_branch
      %64 = sbr.rel (0) target = $region17
    $region16: #{tpu_custom_call.1} parent=1 // pred_region
      %66 = vsyncadd [#allocation7], 0
      %s68 = sshll.u32 [#allocation6], 4
      %s69 = int_to_ptr.vmem [resolvable:$true] %s68
      %s70 = sshll.u32 %s2, 4
      %s71 = int_to_ptr.hbm [resolvable:$true] %s70
      %73 = dma.vmem_to_hbm [thread:$0]  %s69, 16, %s71, [#allocation7]
    $region17: #{tpu_custom_call.1} parent=1 // pred_fallthru
      _
    // Predicated region
    $region18: #{tpu_custom_call.1} parent=1 // pred_check
      _
    $region19: #{tpu_custom_call.1} parent=1 // pred_check_branch
      %75 = sbr.rel (0) target = $region21
    $region20: #{tpu_custom_call.1} parent=1 // pred_region
      %77 = dma.done [#allocation4], 16
    $region21: #{tpu_custom_call.1} parent=1 // pred_fallthru
      _
    // Predicated region
    $region22: #{tpu_custom_call.1} parent=1 // pred_check
      _
    $region23: #{tpu_custom_call.1} parent=1 // pred_check_branch
      %79 = sbr.rel (0) target = $region25
    $region24: #{tpu_custom_call.1} parent=1 // pred_region
      %81 = dma.done [#allocation7], 16
    $region25: #{tpu_custom_call.1} parent=1 // pred_fallthru
      _
    %82 = vsyncpa [#allocation3], 1
    %83 = vsyncpa [#allocation4], 1
    %84 = vsyncpa [#allocation7], 1

</llo_original>
